<compile_context>
chip_gen: v7x
topology: tpu7x:2x2x1
jax: 0.10.0
libtpu: 0.0.40
codegen_flags: <defaults>
</compile_context>

<pallas_src>
from typing import NamedTuple

import jax
import jax.numpy as jnp
from jax.experimental import pallas as pl
from jax.experimental.pallas import tpu as pltpu


_MAIN_ORDER = ("he1", "he2", "te1", "te2", "ns1", "ns2", "m1", "m2")
_TAIL_ORDER = ("v", "pol", "pd")


class SkyNetMeta(NamedTuple):
    num_players: int
    hand_emb: int
    sp_out: int
    ns_out: int
    emb: int
    n_val: int
    n_act: int
    w_offsets: tuple  # ((row_offset, rows) per _MAIN_ORDER entry), Python ints (static)


# ----------------------------------------------------------------------------- kernel
def _make_skynet1d_kernel(batch, meta: SkyNetMeta):
    P, HE, SPO, NSO = meta.num_players, meta.hand_emb, meta.sp_out, meta.ns_out
    NV, NA = meta.n_val, meta.n_act
    offs = dict(zip(_MAIN_ORDER, meta.w_offsets))
    bidx = {name: i for i, name in enumerate(_MAIN_ORDER)}

    def kernel(x_sp_ref, x_ns_ref, w_ref, b_ref, wt_ref, bt_ref, out_ref, e_ref):
        relu = lambda t: jnp.maximum(t, 0.0)
        dot = lambda a, b: jnp.dot(a, b, preferred_element_type=jnp.float32)
        w = lambda name: w_ref[offs[name][0]:offs[name][0] + offs[name][1], :]
        bias = lambda name: b_ref[bidx[name]:bidx[name] + 1, :]

        # --- Spatia1DInputHead hand encoder: all (batch, player) rows at once,
        #     batch-major row order (matches the pure-view flatten in the wrapper).
        h = relu(dot(x_sp_ref[...], w("he1")) + bias("he1"))
        e_ref[...] = relu(dot(h, w("he2")) + bias("he2"))            # (B*P, HE)

        # '(b p) f -> b (p f)' regroup folded into P sublane-strided dots against
        # per-player row blocks of the te1 weight (no host-side transpose copy).
        o_te1 = offs["te1"][0]
        t = bias("te1")                                              # (1, SPO), broadcasts
        for p in range(P):                                           # static unroll, P tiny
            e_p = e_ref[pl.ds(p, batch, stride=P), :]                # rows p, p+P, ... (B, HE)
            t = t + dot(e_p, w_ref[o_te1 + p * HE:o_te1 + (p + 1) * HE, :])
        spatial_out = relu(dot(relu(t), w("te2")) + bias("te2"))     # (B, SPO)

        # --- NonSpatialInputHead ------------------------------------------------
        n = relu(dot(x_ns_ref[...], w("ns1")) + bias("ns1"))
        non_spatial_out = relu(dot(n, w("ns2")) + bias("ns2"))       # (B, NSO)

        # --- trunk MLP; concat([spatial_out, non_spatial_out]) folded into two
        #     row-block dots of the m1 weight.
        o_m1 = offs["m1"][0]
        m = relu(dot(spatial_out, w_ref[o_m1:o_m1 + SPO, :])
                 + dot(non_spatial_out, w_ref[o_m1 + SPO:o_m1 + SPO + NSO, :])
                 + bias("m1"))
        m = relu(dot(m, w("m2")) + bias("m2"))                       # (B, emb)

        # --- fused tails: ONE dot, then lane-slice logits (value | policy | pdiff).
        logits = dot(m, wt_ref[...]) + bt_ref[...]                   # (B, NV+NA+NV)

        def softmax_rows(z):
            z = jnp.exp(z - jnp.max(z, axis=-1, keepdims=True))
            return z * pl.reciprocal(jnp.sum(z, axis=-1, keepdims=True), approx=False)

        value = softmax_rows(logits[:, :NV])
        policy = softmax_rows(logits[:, NV:NV + NA])
        pdiff = logits[:, NV + NA:]
        out_ref[...] = jnp.concatenate([value, policy, pdiff], axis=-1).astype(out_ref.dtype)

    return kernel


# ----------------------------------------------------------------------------- params
def init_torch_layout_params(key, *, d_sp, f_ns, num_players,
                             hand_emb=32, sp_out=32, emb=32, n_val=2, n_act=10):
    """PyTorch-layout (out,in) weights with nn.Linear's default U(+/-1/sqrt(fan_in)) init."""
    def linear(k, fan_in, fan_out):
        kw, kb = jax.random.split(k)
        bound = 1.0 / (fan_in ** 0.5)
        w = jax.random.uniform(kw, (fan_out, fan_in), jnp.float32, -bound, bound)
        b = jax.random.uniform(kb, (fan_out,), jnp.float32, -bound, bound)
        return w, b

    ks = jax.random.split(key, 11)
    return {
        "he1": linear(ks[0], d_sp, hand_emb),
        "he2": linear(ks[1], hand_emb, hand_emb),
        "te1": linear(ks[2], num_players * hand_emb, sp_out),
        "te2": linear(ks[3], sp_out, sp_out),
        "ns1": linear(ks[4], f_ns, 32),
        "ns2": linear(ks[5], 32, 32),
        "m1": linear(ks[6], sp_out + 32, emb),
        "m2": linear(ks[7], emb, emb),
        "v": linear(ks[8], emb, n_val),
        "pol": linear(ks[9], emb, n_act),
        "pd": linear(ks[10], emb, n_val),
    }


def pack_params_for_kernel(torch_params, num_players):
    """One-time init repack into 4 slabs:
         w_main (R, 32): hidden-layer weights transposed to (in,out), row-stacked,
                         each segment zero-padded to a multiple of 8 sublanes,
         b_main (8, 32): the 8 hidden-layer biases,
         w_tail (emb, NV+NA+NV), b_tail (1, NV+NA+NV): fused value|policy|pdiff tails."""
    rows, offsets, off = [], [], 0
    for name in _MAIN_ORDER:
        wt = jnp.asarray(torch_params[name][0], jnp.float32).T       # (in, out)
        assert wt.shape[1] == 32, f"{name}: expected out_features=32, got {wt.shape[1]}"
        k = wt.shape[0]
        pad = (-k) % 8
        if pad:
            wt = jnp.pad(wt, ((0, pad), (0, 0)))
        offsets.append((off, k))
        rows.append(wt)
        off += k + pad
    w_main = jnp.concatenate(rows, axis=0)                            # (R, 32)
    b_main = jnp.stack([jnp.asarray(torch_params[n][1], jnp.float32) for n in _MAIN_ORDER])

    w_tail = jnp.concatenate(
        [jnp.asarray(torch_params[n][0], jnp.float32).T for n in _TAIL_ORDER], axis=1)
    b_tail = jnp.concatenate(
        [jnp.asarray(torch_params[n][1], jnp.float32) for n in _TAIL_ORDER]).reshape(1, -1)

    meta = SkyNetMeta(
        num_players=num_players,
        hand_emb=torch_params["he2"][0].shape[0],
        sp_out=torch_params["te2"][0].shape[0],
        ns_out=torch_params["ns2"][0].shape[0],
        emb=torch_params["m2"][0].shape[0],
        n_val=torch_params["v"][0].shape[0],
        n_act=torch_params["pol"][0].shape[0],
        w_offsets=tuple(offsets),
    )
    return (w_main, b_main, w_tail, b_tail), meta


# ----------------------------------------------------------------------------- forward
def skynet1d_forward(kernel_params, meta: SkyNetMeta, spatial, non_spatial):
    b, p = spatial.shape[0], spatial.shape[1]
    d_sp = spatial.shape[2] * spatial.shape[3] * spatial.shape[4]
    n_out = 2 * meta.n_val + meta.n_act

    # Pure-view flatten 'b p h w c -> (b p) (h w c)' (no transpose copy on the host);
    # the per-player regroup happens in-kernel via sublane-strided reads.
    x_sp = spatial.reshape(b * p, d_sp).astype(jnp.float32)
    x_ns = non_spatial.astype(jnp.float32)

    w_main, b_main, w_tail, b_tail = kernel_params
    operands = (x_sp, x_ns, w_main, b_main, w_tail, b_tail)

    def full(shape):
        return pl.BlockSpec(shape, lambda i: (0,) * len(shape))

    flops = 2 * b * (
        p * d_sp * meta.hand_emb
        + p * meta.hand_emb * meta.hand_emb
        + p * meta.hand_emb * meta.sp_out
        + meta.sp_out * meta.sp_out
        + non_spatial.shape[1] * meta.ns_out
        + meta.ns_out * meta.ns_out
        + (meta.sp_out + meta.ns_out) * meta.emb
        + meta.emb * meta.emb
        + meta.emb * n_out)
    bytes_accessed = 4 * (sum(int(op.size) for op in operands) + b * n_out)
    cost = pl.CostEstimate(flops=flops,
                           transcendentals=b * (meta.n_val + meta.n_act),
                           bytes_accessed=bytes_accessed)

    out = pl.pallas_call(
        _make_skynet1d_kernel(b, meta),
        out_shape=jax.ShapeDtypeStruct((b, n_out), jnp.float32),
        grid=(1,),
        in_specs=[full(op.shape) for op in operands],
        out_specs=full((b, n_out)),
        scratch_shapes=[pltpu.VMEM((b * p, meta.hand_emb), jnp.float32)],
        compiler_params=pltpu.CompilerParams(dimension_semantics=("arbitrary",)),
        cost_estimate=cost,
    )(*operands)

    # Split the fused output slab with cheap XLA lane slices.
    value = out[:, :meta.n_val]
    policy = out[:, meta.n_val:meta.n_val + meta.n_act]
    pdiff = out[:, meta.n_val + meta.n_act:]
    return value, policy, pdiff


# ----------------------------------------------------------------------------- reference
def _reference_forward(torch_params, spatial, non_spatial):
    lin = lambda x, wb: x @ wb[0].T + wb[1]
    relu = lambda x: jnp.maximum(x, 0.0)
    b, p_players = spatial.shape[0], spatial.shape[1]
    hand_emb = torch_params["he2"][0].shape[0]

    xs = spatial.reshape(b * p_players, -1)                  # 'b p h w c -> (b p)(h w c)'
    e = relu(lin(relu(lin(xs, torch_params["he1"])), torch_params["he2"]))
    x = e.reshape(b, p_players * hand_emb)                   # '(b p) f -> b (p f)'
    sp = relu(lin(relu(lin(x, torch_params["te1"])), torch_params["te2"]))
    n = relu(lin(relu(lin(non_spatial, torch_params["ns1"])), torch_params["ns2"]))
    c = jnp.concatenate([sp, n], axis=1)
    m = relu(lin(relu(lin(c, torch_params["m1"])), torch_params["m2"]))
    value = jax.nn.softmax(lin(m, torch_params["v"]), axis=1)
    policy = jax.nn.softmax(lin(m, torch_params["pol"]), axis=1)
    pdiff = lin(m, torch_params["pd"])
    return value, policy, pdiff


# ----------------------------------------------------------------------------- demo
if __name__ == "__main__":
    B, P, H, W, C = 8, 2, 3, 4, 8       # small skyjo-like board: 2 players, 3x4 grid, 8 channels
    F_NS = 16                           # non-spatial features
    N_VAL = P                           # value / point-diff outputs = num players
    N_ACT = 10                          # policy actions

    key = jax.random.PRNGKey(0)
    k_params, k_sp, k_ns = jax.random.split(key, 3)

    torch_params = init_torch_layout_params(
        k_params, d_sp=H * W * C, f_ns=F_NS, num_players=P,
        hand_emb=32, sp_out=32, emb=32, n_val=N_VAL, n_act=N_ACT)
    kernel_params, meta = pack_params_for_kernel(torch_params, num_players=P)

    spatial = jax.random.normal(k_sp, (B, P, H, W, C), jnp.float32)
    non_spatial = jax.random.normal(k_ns, (B, F_NS), jnp.float32)

    fwd = jax.jit(lambda params, sp, ns: skynet1d_forward(params, meta, sp, ns))
    value, policy, pdiff = jax.block_until_ready(fwd(kernel_params, spatial, non_spatial))

    with jax.default_matmul_precision("highest"):
        ref_value, ref_policy, ref_pdiff = _reference_forward(torch_params, spatial, non_spatial)

    assert value.shape == (B, N_VAL), value.shape
    assert policy.shape == (B, N_ACT), policy.shape
    assert pdiff.shape == (B, N_VAL), pdiff.shape
    assert jnp.allclose(value, ref_value, atol=1e-4, rtol=1e-4), "value mismatch"
    assert jnp.allclose(policy, ref_policy, atol=1e-4, rtol=1e-4), "policy mismatch"
    assert jnp.allclose(pdiff, ref_pdiff, atol=1e-4, rtol=1e-4), "point-diff mismatch"
    assert jnp.allclose(jnp.sum(value, axis=1), 1.0, atol=1e-5)
    assert jnp.allclose(jnp.sum(policy, axis=1), 1.0, atol=1e-5)

    print("KERNEL_OK")
</pallas_src>

<mosaic_0001>
module attributes {stable_mosaic.version = 11 : i64} {
  func.func @kernel(%arg0: i32, %arg1: memref<16x96xf32, #tpu.memory_space<vmem>>, %arg2: memref<8x16xf32, #tpu.memory_space<vmem>>, %arg3: memref<368x32xf32, #tpu.memory_space<vmem>>, %arg4: memref<8x32xf32, #tpu.memory_space<vmem>>, %arg5: memref<32x14xf32, #tpu.memory_space<vmem>>, %arg6: memref<1x14xf32, #tpu.memory_space<vmem>>, %arg7: memref<8x14xf32, #tpu.memory_space<vmem>>, %arg8: memref<16x32xf32, #tpu.memory_space<vmem>>) attributes {dimension_semantics = [#tpu.dimension_semantics<arbitrary>], iteration_bounds = array<i64: 1>, scalar_prefetch = 0 : i64, scratch_operands = 1 : i64, tpu.core_type = #tpu.core_type<tc>, window_params = [{pipeline_mode = #tpu.pipeline_mode<synchronous>, transform_indices = @transform_0, window_bounds = array<i64: 16, 96>}, {pipeline_mode = #tpu.pipeline_mode<synchronous>, transform_indices = @transform_1, window_bounds = array<i64: 8, 16>}, {pipeline_mode = #tpu.pipeline_mode<synchronous>, transform_indices = @transform_2, window_bounds = array<i64: 368, 32>}, {pipeline_mode = #tpu.pipeline_mode<synchronous>, transform_indices = @transform_3, window_bounds = array<i64: 8, 32>}, {pipeline_mode = #tpu.pipeline_mode<synchronous>, transform_indices = @transform_4, window_bounds = array<i64: 32, 14>}, {pipeline_mode = #tpu.pipeline_mode<synchronous>, transform_indices = @transform_5, window_bounds = array<i64: 1, 14>}, {pipeline_mode = #tpu.pipeline_mode<synchronous>, transform_indices = @transform_6, window_bounds = array<i64: 8, 14>}]} {
    %c0 = arith.constant 0 : index
    %c0_0 = arith.constant 0 : index
    %0 = vector.load %arg1[%c0, %c0_0] : memref<16x96xf32, #tpu.memory_space<vmem>>, vector<16x96xf32>
    %c0_1 = arith.constant 0 : index
    %c0_2 = arith.constant 0 : index
    %1 = vector.load %arg3[%c0_1, %c0_2] : memref<368x32xf32, #tpu.memory_space<vmem>>, vector<96x32xf32>
    %cst = arith.constant dense<0.000000e+00> : vector<16x32xf32>
    %2 = tpu.matmul %0, %1, %cst {dimension_numbers = #tpu.dot_dimension_numbers<[1], [0], [0], [1], [0, 0, 1, 1], [], []>} : vector<16x96xf32>, vector<96x32xf32>, vector<16x32xf32> -> vector<16x32xf32>
    %c0_3 = arith.constant 0 : index
    %c0_4 = arith.constant 0 : index
    %3 = vector.load %arg4[%c0_3, %c0_4] : memref<8x32xf32, #tpu.memory_space<vmem>>, vector<1x32xf32>
    %4 = vector.broadcast %3 : vector<1x32xf32> to vector<16x32xf32>
    %5 = arith.addf %2, %4 : vector<16x32xf32>
    %cst_5 = arith.constant 0.000000e+00 : f32
    %6 = vector.broadcast %cst_5 : f32 to vector<16x32xf32>
    %7 = arith.maximumf %5, %6 : vector<16x32xf32>
    %c96 = arith.constant 96 : index
    %c0_6 = arith.constant 0 : index
    %8 = vector.load %arg3[%c96, %c0_6] : memref<368x32xf32, #tpu.memory_space<vmem>>, vector<32x32xf32>
    %cst_7 = arith.constant dense<0.000000e+00> : vector<16x32xf32>
    %9 = tpu.matmul %7, %8, %cst_7 {dimension_numbers = #tpu.dot_dimension_numbers<[1], [0], [0], [1], [0, 0, 1, 1], [], []>} : vector<16x32xf32>, vector<32x32xf32>, vector<16x32xf32> -> vector<16x32xf32>
    %c1 = arith.constant 1 : index
    %c0_8 = arith.constant 0 : index
    %10 = vector.load %arg4[%c1, %c0_8] : memref<8x32xf32, #tpu.memory_space<vmem>>, vector<1x32xf32>
    %11 = vector.broadcast %10 : vector<1x32xf32> to vector<16x32xf32>
    %12 = arith.addf %9, %11 : vector<16x32xf32>
    %cst_9 = arith.constant 0.000000e+00 : f32
    %13 = vector.broadcast %cst_9 : f32 to vector<16x32xf32>
    %14 = arith.maximumf %12, %13 : vector<16x32xf32>
    %c0_10 = arith.constant 0 : index
    %c0_11 = arith.constant 0 : index
    %15 = vector.load %arg8[%c0_10, %c0_11] : memref<16x32xf32, #tpu.memory_space<vmem>>, vector<16x32xf32>
    tpu.vector_store %arg8[%c0_10, %c0_11], %14 {strides = array<i32>} : memref<16x32xf32, #tpu.memory_space<vmem>>, vector<16x32xf32>,
    %c2 = arith.constant 2 : index
    %c0_12 = arith.constant 0 : index
    %16 = vector.load %arg4[%c2, %c0_12] : memref<8x32xf32, #tpu.memory_space<vmem>>, vector<1x32xf32>
    %c0_13 = arith.constant 0 : index
    %c0_14 = arith.constant 0 : index
    %17 = tpu.strided_load %arg8[%c0_13, %c0_14] {strides = array<i32: 2, 1>} : memref<16x32xf32, #tpu.memory_space<vmem>>, vector<8x32xf32>
    %c128 = arith.constant 128 : index
    %c0_15 = arith.constant 0 : index
    %18 = vector.load %arg3[%c128, %c0_15] : memref<368x32xf32, #tpu.memory_space<vmem>>, vector<32x32xf32>
    %cst_16 = arith.constant dense<0.000000e+00> : vector<8x32xf32>
    %19 = tpu.matmul %17, %18, %cst_16 {dimension_numbers = #tpu.dot_dimension_numbers<[1], [0], [0], [1], [0, 0, 1, 1], [], []>} : vector<8x32xf32>, vector<32x32xf32>, vector<8x32xf32> -> vector<8x32xf32>
    %20 = vector.broadcast %16 : vector<1x32xf32> to vector<8x32xf32>
    %21 = arith.addf %20, %19 : vector<8x32xf32>
    %c1_17 = arith.constant 1 : index
    %c0_18 = arith.constant 0 : index
    %22 = tpu.strided_load %arg8[%c1_17, %c0_18] {strides = array<i32: 2, 1>} : memref<16x32xf32, #tpu.memory_space<vmem>>, vector<8x32xf32>
    %c160 = arith.constant 160 : index
    %c0_19 = arith.constant 0 : index
    %23 = vector.load %arg3[%c160, %c0_19] : memref<368x32xf32, #tpu.memory_space<vmem>>, vector<32x32xf32>
    %cst_20 = arith.constant dense<0.000000e+00> : vector<8x32xf32>
    %24 = tpu.matmul %22, %23, %cst_20 {dimension_numbers = #tpu.dot_dimension_numbers<[1], [0], [0], [1], [0, 0, 1, 1], [], []>} : vector<8x32xf32>, vector<32x32xf32>, vector<8x32xf32> -> vector<8x32xf32>
    %25 = arith.addf %21, %24 : vector<8x32xf32>
    %cst_21 = arith.constant 0.000000e+00 : f32
    %26 = vector.broadcast %cst_21 : f32 to vector<8x32xf32>
    %27 = arith.maximumf %25, %26 : vector<8x32xf32>
    %c192 = arith.constant 192 : index
    %c0_22 = arith.constant 0 : index
    %28 = vector.load %arg3[%c192, %c0_22] : memref<368x32xf32, #tpu.memory_space<vmem>>, vector<32x32xf32>
    %cst_23 = arith.constant dense<0.000000e+00> : vector<8x32xf32>
    %29 = tpu.matmul %27, %28, %cst_23 {dimension_numbers = #tpu.dot_dimension_numbers<[1], [0], [0], [1], [0, 0, 1, 1], [], []>} : vector<8x32xf32>, vector<32x32xf32>, vector<8x32xf32> -> vector<8x32xf32>
    %c3 = arith.constant 3 : index
    %c0_24 = arith.constant 0 : index
    %30 = vector.load %arg4[%c3, %c0_24] : memref<8x32xf32, #tpu.memory_space<vmem>>, vector<1x32xf32>
    %31 = vector.broadcast %30 : vector<1x32xf32> to vector<8x32xf32>
    %32 = arith.addf %29, %31 : vector<8x32xf32>
    %cst_25 = arith.constant 0.000000e+00 : f32
    %33 = vector.broadcast %cst_25 : f32 to vector<8x32xf32>
    %34 = arith.maximumf %32, %33 : vector<8x32xf32>
    %c0_26 = arith.constant 0 : index
    %c0_27 = arith.constant 0 : index
    %35 = vector.load %arg2[%c0_26, %c0_27] : memref<8x16xf32, #tpu.memory_space<vmem>>, vector<8x16xf32>
    %c224 = arith.constant 224 : index
    %c0_28 = arith.constant 0 : index
    %36 = vector.load %arg3[%c224, %c0_28] : memref<368x32xf32, #tpu.memory_space<vmem>>, vector<16x32xf32>
    %cst_29 = arith.constant dense<0.000000e+00> : vector<8x32xf32>
    %37 = tpu.matmul %35, %36, %cst_29 {dimension_numbers = #tpu.dot_dimension_numbers<[1], [0], [0], [1], [0, 0, 1, 1], [], []>} : vector<8x16xf32>, vector<16x32xf32>, vector<8x32xf32> -> vector<8x32xf32>
    %c4 = arith.constant 4 : index
    %c0_30 = arith.constant 0 : index
    %38 = vector.load %arg4[%c4, %c0_30] : memref<8x32xf32, #tpu.memory_space<vmem>>, vector<1x32xf32>
    %39 = vector.broadcast %38 : vector<1x32xf32> to vector<8x32xf32>
    %40 = arith.addf %37, %39 : vector<8x32xf32>
    %cst_31 = arith.constant 0.000000e+00 : f32
    %41 = vector.broadcast %cst_31 : f32 to vector<8x32xf32>
    %42 = arith.maximumf %40, %41 : vector<8x32xf32>
    %c240 = arith.constant 240 : index
    %c0_32 = arith.constant 0 : index
    %43 = vector.load %arg3[%c240, %c0_32] : memref<368x32xf32, #tpu.memory_space<vmem>>, vector<32x32xf32>
    %cst_33 = arith.constant dense<0.000000e+00> : vector<8x32xf32>
    %44 = tpu.matmul %42, %43, %cst_33 {dimension_numbers = #tpu.dot_dimension_numbers<[1], [0], [0], [1], [0, 0, 1, 1], [], []>} : vector<8x32xf32>, vector<32x32xf32>, vector<8x32xf32> -> vector<8x32xf32>
    %c5 = arith.constant 5 : index
    %c0_34 = arith.constant 0 : index
    %45 = vector.load %arg4[%c5, %c0_34] : memref<8x32xf32, #tpu.memory_space<vmem>>, vector<1x32xf32>
    %46 = vector.broadcast %45 : vector<1x32xf32> to vector<8x32xf32>
    %47 = arith.addf %44, %46 : vector<8x32xf32>
    %cst_35 = arith.constant 0.000000e+00 : f32
    %48 = vector.broadcast %cst_35 : f32 to vector<8x32xf32>
    %49 = arith.maximumf %47, %48 : vector<8x32xf32>
    %c272 = arith.constant 272 : index
    %c0_36 = arith.constant 0 : index
    %50 = vector.load %arg3[%c272, %c0_36] : memref<368x32xf32, #tpu.memory_space<vmem>>, vector<32x32xf32>
    %cst_37 = arith.constant dense<0.000000e+00> : vector<8x32xf32>
    %51 = tpu.matmul %34, %50, %cst_37 {dimension_numbers = #tpu.dot_dimension_numbers<[1], [0], [0], [1], [0, 0, 1, 1], [], []>} : vector<8x32xf32>, vector<32x32xf32>, vector<8x32xf32> -> vector<8x32xf32>
    %c304 = arith.constant 304 : index
    %c0_38 = arith.constant 0 : index
    %52 = vector.load %arg3[%c304, %c0_38] : memref<368x32xf32, #tpu.memory_space<vmem>>, vector<32x32xf32>
    %cst_39 = arith.constant dense<0.000000e+00> : vector<8x32xf32>
    %53 = tpu.matmul %49, %52, %cst_39 {dimension_numbers = #tpu.dot_dimension_numbers<[1], [0], [0], [1], [0, 0, 1, 1], [], []>} : vector<8x32xf32>, vector<32x32xf32>, vector<8x32xf32> -> vector<8x32xf32>
    %54 = arith.addf %51, %53 : vector<8x32xf32>
    %c6 = arith.constant 6 : index
    %c0_40 = arith.constant 0 : index
    %55 = vector.load %arg4[%c6, %c0_40] : memref<8x32xf32, #tpu.memory_space<vmem>>, vector<1x32xf32>
    %56 = vector.broadcast %55 : vector<1x32xf32> to vector<8x32xf32>
    %57 = arith.addf %54, %56 : vector<8x32xf32>
    %cst_41 = arith.constant 0.000000e+00 : f32
    %58 = vector.broadcast %cst_41 : f32 to vector<8x32xf32>
    %59 = arith.maximumf %57, %58 : vector<8x32xf32>
    %c336 = arith.constant 336 : index
    %c0_42 = arith.constant 0 : index
    %60 = vector.load %arg3[%c336, %c0_42] : memref<368x32xf32, #tpu.memory_space<vmem>>, vector<32x32xf32>
    %cst_43 = arith.constant dense<0.000000e+00> : vector<8x32xf32>
    %61 = tpu.matmul %59, %60, %cst_43 {dimension_numbers = #tpu.dot_dimension_numbers<[1], [0], [0], [1], [0, 0, 1, 1], [], []>} : vector<8x32xf32>, vector<32x32xf32>, vector<8x32xf32> -> vector<8x32xf32>
    %c7 = arith.constant 7 : index
    %c0_44 = arith.constant 0 : index
    %62 = vector.load %arg4[%c7, %c0_44] : memref<8x32xf32, #tpu.memory_space<vmem>>, vector<1x32xf32>
    %63 = vector.broadcast %62 : vector<1x32xf32> to vector<8x32xf32>
    %64 = arith.addf %61, %63 : vector<8x32xf32>
    %cst_45 = arith.constant 0.000000e+00 : f32
    %65 = vector.broadcast %cst_45 : f32 to vector<8x32xf32>
    %66 = arith.maximumf %64, %65 : vector<8x32xf32>
    %c0_46 = arith.constant 0 : index
    %c0_47 = arith.constant 0 : index
    %67 = vector.load %arg5[%c0_46, %c0_47] : memref<32x14xf32, #tpu.memory_space<vmem>>, vector<32x14xf32>
    %cst_48 = arith.constant dense<0.000000e+00> : vector<8x14xf32>
    %68 = tpu.matmul %66, %67, %cst_48 {dimension_numbers = #tpu.dot_dimension_numbers<[1], [0], [0], [1], [0, 0, 1, 1], [], []>} : vector<8x32xf32>, vector<32x14xf32>, vector<8x14xf32> -> vector<8x14xf32>
    %c0_49 = arith.constant 0 : index
    %c0_50 = arith.constant 0 : index
    %69 = vector.load %arg6[%c0_49, %c0_50] : memref<1x14xf32, #tpu.memory_space<vmem>>, vector<1x14xf32>
    %70 = vector.broadcast %69 : vector<1x14xf32> to vector<8x14xf32>
    %71 = arith.addf %68, %70 : vector<8x14xf32>
    %72 = vector.extract_strided_slice %71 {offsets = [0, 0], sizes = [8, 2], strides = [1, 1]} : vector<8x14xf32> to vector<8x2xf32>
    %cst_51 = arith.constant dense<0xFF800000> : vector<8xf32>
    %73 = vector.multi_reduction <maximumf>, %72, %cst_51 [1] : vector<8x2xf32> to vector<8xf32>
    %74 = vector.shape_cast %73 : vector<8xf32> to vector<8x1xf32>
    %75 = vector.broadcast %74 : vector<8x1xf32> to vector<8x2xf32>
    %76 = arith.subf %72, %75 : vector<8x2xf32>
    %77 = math.exp %76 : vector<8x2xf32>
    %cst_52 = arith.constant dense<0.000000e+00> : vector<8xf32>
    %78 = vector.multi_reduction <add>, %77, %cst_52 [1] : vector<8x2xf32> to vector<8xf32>
    %79 = vector.shape_cast %78 : vector<8xf32> to vector<8x1xf32>
    %80 = tpu.reciprocal %79 : vector<8x1xf32> -> vector<8x1xf32>
    %81 = vector.broadcast %80 : vector<8x1xf32> to vector<8x2xf32>
    %82 = arith.mulf %77, %81 : vector<8x2xf32>
    %83 = vector.extract_strided_slice %71 {offsets = [0, 2], sizes = [8, 10], strides = [1, 1]} : vector<8x14xf32> to vector<8x10xf32>
    %cst_53 = arith.constant dense<0xFF800000> : vector<8xf32>
    %84 = vector.multi_reduction <maximumf>, %83, %cst_53 [1] : vector<8x10xf32> to vector<8xf32>
    %85 = vector.shape_cast %84 : vector<8xf32> to vector<8x1xf32>
    %86 = vector.broadcast %85 : vector<8x1xf32> to vector<8x10xf32>
    %87 = arith.subf %83, %86 : vector<8x10xf32>
    %88 = math.exp %87 : vector<8x10xf32>
    %cst_54 = arith.constant dense<0.000000e+00> : vector<8xf32>
    %89 = vector.multi_reduction <add>, %88, %cst_54 [1] : vector<8x10xf32> to vector<8xf32>
    %90 = vector.shape_cast %89 : vector<8xf32> to vector<8x1xf32>
    %91 = tpu.reciprocal %90 : vector<8x1xf32> -> vector<8x1xf32>
    %92 = vector.broadcast %91 : vector<8x1xf32> to vector<8x10xf32>
    %93 = arith.mulf %88, %92 : vector<8x10xf32>
    %94 = vector.extract_strided_slice %71 {offsets = [0, 12], sizes = [8, 2], strides = [1, 1]} : vector<8x14xf32> to vector<8x2xf32>
    %95 = tpu.concatenate %82, %93, %94 in 1 : vector<8x2xf32>, vector<8x10xf32>, vector<8x2xf32> -> vector<8x14xf32>
    %c0_55 = arith.constant 0 : index
    %c0_56 = arith.constant 0 : index
    %96 = vector.load %arg7[%c0_55, %c0_56] : memref<8x14xf32, #tpu.memory_space<vmem>>, vector<8x14xf32>
    tpu.vector_store %arg7[%c0_55, %c0_56], %95 {strides = array<i32>} : memref<8x14xf32, #tpu.memory_space<vmem>>, vector<8x14xf32>,
    return
  }
  func.func @transform_0(%arg0: i32) -> (i32, i32) {
    %c0_i32 = arith.constant 0 : i32
    %c0_i32_0 = arith.constant 0 : i32
    %c0_i32_1 = arith.constant 0 : i32
    return %c0_i32, %c0_i32_0 : i32, i32
  }
  func.func @transform_1(%arg0: i32) -> (i32, i32) {
    %c0_i32 = arith.constant 0 : i32
    %c0_i32_0 = arith.constant 0 : i32
    %c0_i32_1 = arith.constant 0 : i32
    return %c0_i32, %c0_i32_0 : i32, i32
  }
  func.func @transform_2(%arg0: i32) -> (i32, i32) {
    %c0_i32 = arith.constant 0 : i32
    %c0_i32_0 = arith.constant 0 : i32
    %c0_i32_1 = arith.constant 0 : i32
    return %c0_i32, %c0_i32_0 : i32, i32
  }
  func.func @transform_3(%arg0: i32) -> (i32, i32) {
    %c0_i32 = arith.constant 0 : i32
    %c0_i32_0 = arith.constant 0 : i32
    %c0_i32_1 = arith.constant 0 : i32
    return %c0_i32, %c0_i32_0 : i32, i32
  }
  func.func @transform_4(%arg0: i32) -> (i32, i32) {
    %c0_i32 = arith.constant 0 : i32
    %c0_i32_0 = arith.constant 0 : i32
    %c0_i32_1 = arith.constant 0 : i32
    return %c0_i32, %c0_i32_0 : i32, i32
  }
  func.func @transform_5(%arg0: i32) -> (i32, i32) {
    %c0_i32 = arith.constant 0 : i32
    %c0_i32_0 = arith.constant 0 : i32
    %c0_i32_1 = arith.constant 0 : i32
    return %c0_i32, %c0_i32_0 : i32, i32
  }
  func.func @transform_6(%arg0: i32) -> (i32, i32) {
    %c0_i32 = arith.constant 0 : i32
    %c0_i32_0 = arith.constant 0 : i32
    %c0_i32_1 = arith.constant 0 : i32
    return %c0_i32, %c0_i32_0 : i32, i32
  }
}

</mosaic_0001>

<llo_original>
// kernel: _lambda_.1
$region0: #{_lambda_.1}
  #allocation0 [shape = 'u32[]', space=smem, size = 0x4, offset = 0x4, fixed_abs, tag = 'smem constant byte address 0x4 - core index']
  #allocation1 [shape = 'u32[144,128]{1,0:T(1,128)}', space=vmem, size = 0x12000, scoped, tag = 'internal scratch']
  #allocation2 [shape = 'f32[16,32]{1,0:T(8,128)}', space=vmem, size = 0x2000, scoped, tag = 'scratch operand']
  %s0 = inlined_call_operand.vmem [shape: f32[16,96], index: 0, kind: input, shape index: {}]
  %s1 = inlined_call_operand.vmem [shape: f32[8,16], index: 1, kind: input, shape index: {}]
  %s2 = inlined_call_operand.vmem [shape: f32[368,32], index: 2, kind: input, shape index: {}]
  %s3 = inlined_call_operand.vmem [shape: f32[8,32], index: 3, kind: input, shape index: {}]
  %s4 = inlined_call_operand.vmem [shape: f32[32,14], index: 4, kind: input, shape index: {}]
  %s5 = inlined_call_operand.vmem [shape: f32[1,14], index: 5, kind: input, shape index: {}]
  %s6 = inlined_call_operand.vmem [shape: f32[8,14], index: 6, kind: output, shape index: {}]
  %s7 = sld [smem:[#allocation0]]
  $region34: #{_lambda_.1} parent=0
    _
  %s9 = ssub.s32 1, %s7
  %s10 = scalar_select 0, %s9, %s7
  // Predicated region
  $region2: #{_lambda_.1} parent=0 // pred_check
    _
  $region3: #{_lambda_.1} parent=0 // pred_check_branch
    %12 = sbr.rel (0) target = $region5
  $region4: #{_lambda_.1} parent=0 // pred_region
    _
  $region5: #{_lambda_.1} parent=0 // pred_fallthru
    _
  // Predicated region
  $region6: #{_lambda_.1} parent=0 // pred_check
    _
  $region7: #{_lambda_.1} parent=0 // pred_check_branch
    %14 = sbr.rel (0) target = $region9
  $region8: #{_lambda_.1} parent=0 // pred_region
    _
  $region9: #{_lambda_.1} parent=0 // pred_fallthru
    _
  // Predicated region
  $region10: #{_lambda_.1} parent=0 // pred_check
    _
  $region11: #{_lambda_.1} parent=0 // pred_check_branch
    %16 = sbr.rel (0) target = $region13
  $region12: #{_lambda_.1} parent=0 // pred_region
    _
  $region13: #{_lambda_.1} parent=0 // pred_fallthru
    _
  // Predicated region
  $region14: #{_lambda_.1} parent=0 // pred_check
    _
  $region15: #{_lambda_.1} parent=0 // pred_check_branch
    %18 = sbr.rel (0) target = $region17
  $region16: #{_lambda_.1} parent=0 // pred_region
    _
  $region17: #{_lambda_.1} parent=0 // pred_fallthru
    _
  // Predicated region
  $region18: #{_lambda_.1} parent=0 // pred_check
    _
  $region19: #{_lambda_.1} parent=0 // pred_check_branch
    %20 = sbr.rel (0) target = $region21
  $region20: #{_lambda_.1} parent=0 // pred_region
    _
  $region21: #{_lambda_.1} parent=0 // pred_fallthru
    _
  // Predicated region
  $region22: #{_lambda_.1} parent=0 // pred_check
    _
  $region23: #{_lambda_.1} parent=0 // pred_check_branch
    %22 = sbr.rel (0) target = $region25
  $region24: #{_lambda_.1} parent=0 // pred_region
    _
  $region25: #{_lambda_.1} parent=0 // pred_fallthru
    _
  %v23 = vld [vmem:[%s0] sm:$0xff]
  %v24 = vld [vmem:[%s0 + $0x8] sm:$0xff]
  %v25 = vld [vmem:[%s2] sm:$0xff]
  %v26 = vld [vmem:[%s2 + $0x8] sm:$0xff]
  %v27 = vld [vmem:[%s2 + $0x10] sm:$0xff]
  %v28 = vld [vmem:[%s2 + $0x18] sm:$0xff]
  %v29 = vld [vmem:[%s2 + $0x20] sm:$0xff]
  %v30 = vld [vmem:[%s2 + $0x28] sm:$0xff]
  %v31 = vld [vmem:[%s2 + $0x30] sm:$0xff]
  %v32 = vld [vmem:[%s2 + $0x38] sm:$0xff]
  %v33 = vld [vmem:[%s2 + $0x40] sm:$0xff]
  %v34 = vld [vmem:[%s2 + $0x48] sm:$0xff]
  %v35 = vld [vmem:[%s2 + $0x50] sm:$0xff]
  %v36 = vld [vmem:[%s2 + $0x58] sm:$0xff]
  %v37 = vld [vmem:[%s3] sm:$0x1]
  %v38 = vlaneseq
  %v39 = vshrl.u32 %v38, 7
  %v40 = vsub.s32 0, %v39
  %v41 = vrot.slane %v37, %v40
  %vm42 = vcmask 785408
  %v44 = vsel %vm42, %v23, 0
  %v47 = vsel %vm42, %v24, 0
  %49 = vmatprep.subr.mxu0 0.0
  %50 = vmatpush1.msra.mxu0 %v25
  %51 = vmatprep.subr.mxu0 0.0
  %52 = vmatpush1.msra.mxu0 %v26
  %53 = vmatprep.subr.mxu0 0.0
  %54 = vmatpush1.msra.mxu0 %v27
  %55 = vmatprep.subr.mxu0 0.0
  %56 = vmatpush1.msra.mxu0 %v28
  %57 = vmatprep.subr.mxu0 0.0
  %58 = vmatpush1.msra.mxu0 %v29
  %59 = vmatprep.subr.mxu0 0.0
  %60 = vmatpush1.msra.mxu0 %v30
  %61 = vmatprep.subr.mxu0 0.0
  %62 = vmatpush1.msra.mxu0 %v31
  %63 = vmatprep.subr.mxu0 0.0
  %64 = vmatpush1.msra.mxu0 %v32
  %65 = vmatprep.subr.mxu0 0.0
  %66 = vmatpush1.msra.mxu0 %v33
  %67 = vmatprep.subr.mxu0 0.0
  %68 = vmatpush1.msra.mxu0 %v34
  %69 = vmatprep.subr.mxu0 0.0
  %70 = vmatpush1.msra.mxu0 %v35
  %71 = vmatprep.subr.mxu0 0.0
  %72 = vmatpush1.msra.mxu0 %v36
  %73 = vmatprep.subr.mxu0 0.0
  %74 = vmatpush1.msra.mxu0 0.0
  %75 = vmatprep.subr.mxu0 0.0
  %76 = vmatpush1.msra.mxu0 0.0
  %77 = vmatprep.subr.mxu0 0.0
  %78 = vmatpush1.msra.mxu0 0.0
  %79 = vmatprep.subr.mxu0 0.0
  %80 = vmatpush1.msra.mxu0 0.0
  %81 = vmatprep.subr.mxu0 0.0
  %82 = vmatpush1.msra.mxu0 0.0
  %83 = vmatprep.subr.mxu0 0.0
  %84 = vmatpush1.msra.mxu0 0.0
  %85 = vmatprep.subr.mxu0 0.0
  %86 = vmatpush1.msra.mxu0 0.0
  %87 = vmatprep.subr.mxu0 0.0
  %88 = vmatpush1.msra.mxu0 0.0
  %89 = vmatprep.subr.mxu0 0.0
  %90 = vmatpush1.msra.mxu0 0.0
  %91 = vmatprep.subr.mxu0 0.0
  %92 = vmatpush1.msra.mxu0 0.0
  %93 = vmatprep.subr.mxu0 0.0
  %94 = vmatpush1.msra.mxu0 0.0
  %95 = vmatprep.subr.mxu0 0.0
  %96 = vmatpush1.msra.mxu0 0.0
  %97 = vmatprep.subr.mxu0 0.0
  %98 = vmatpush1.msra.mxu0 0.0
  %99 = vmatprep.subr.mxu0 0.0
  %100 = vmatpush1.msra.mxu0 0.0
  %101 = vmatprep.subr.mxu0 0.0
  %102 = vmatpush1.msra.mxu0 0.0
  %103 = vmatprep.subr.mxu0 0.0
  %104 = vmatpush1.msra.mxu0 0.0
  %105 = vmatprep.subr.mxu0 0.0
  %106 = vmatpush1.msra.mxu0 0.0
  %107 = vmatprep.subr.mxu0 0.0
  %108 = vmatpush1.msra.mxu0 0.0
  %109 = vmatprep.subr.mxu0 0.0
  %110 = vmatpush1.msra.mxu0 0.0
  %111 = vmatprep.subr.mxu0 0.0
  %112 = vmatpush1.msra.mxu0 0.0
  %113 = vmatprep.mubr.f32.mxu0 0.0
  %114 = vmatmul.mubr.f32.gmra.mrb[0].mxu0 %v44
  %v115 = vpop.f32.mrb[0].mxu0
  %v116 = vadd.f32 %v41, %v115
  %v117 = vpop.f32.mrb[0].mxu0
  %118 = vmatprep.mubr.f32.mxu0 0.0
  %119 = vmatmul.mubr.f32.gmra.mrb[0].mxu0 %v47
  %v120 = vpop.f32.mrb[0].mxu0
  %v121 = vadd.f32 %v41, %v120
  %v122 = vpop.f32.mrb[0].mxu0
  %123 = vdwg.mxu0
  %v124 = vmax.f32 %v116, 0.0
  %v125 = vmax.f32 %v121, 0.0
  %v126 = vld [vmem:[%s2 + $0x60] sm:$0xff]
  %v127 = vld [vmem:[%s2 + $0x68] sm:$0xff]
  %v128 = vld [vmem:[%s2 + $0x70] sm:$0xff]
  %v129 = vld [vmem:[%s2 + $0x78] sm:$0xff]
  %v130 = vld [vmem:[%s3 + $0x1] sm:$0x1]
  %v131 = vlaneseq
  %v132 = vshrl.u32 %v131, 7
  %v133 = vsub.s32 0, %v132
  %v134 = vrot.slane %v130, %v133
  %vm135 = vcmask 261120
  %v137 = vsel %vm135, %v124, 0
  %v140 = vsel %vm135, %v125, 0
  %142 = vmatprep.subr.mxu0 0.0
  %143 = vmatpush1.msra.mxu0 %v126
  %144 = vmatprep.subr.mxu0 0.0
  %145 = vmatpush1.msra.mxu0 %v127
  %146 = vmatprep.subr.mxu0 0.0
  %147 = vmatpush1.msra.mxu0 %v128
  %148 = vmatprep.subr.mxu0 0.0
  %149 = vmatpush1.msra.mxu0 %v129
  %150 = vmatprep.subr.mxu0 0.0
  %151 = vmatpush1.msra.mxu0 0.0
  %152 = vmatprep.subr.mxu0 0.0
  %153 = vmatpush1.msra.mxu0 0.0
  %154 = vmatprep.subr.mxu0 0.0
  %155 = vmatpush1.msra.mxu0 0.0
  %156 = vmatprep.subr.mxu0 0.0
  %157 = vmatpush1.msra.mxu0 0.0
  %158 = vmatprep.subr.mxu0 0.0
  %159 = vmatpush1.msra.mxu0 0.0
  %160 = vmatprep.subr.mxu0 0.0
  %161 = vmatpush1.msra.mxu0 0.0
  %162 = vmatprep.subr.mxu0 0.0
  %163 = vmatpush1.msra.mxu0 0.0
  %164 = vmatprep.subr.mxu0 0.0
  %165 = vmatpush1.msra.mxu0 0.0
  %166 = vmatprep.subr.mxu0 0.0
  %167 = vmatpush1.msra.mxu0 0.0
  %168 = vmatprep.subr.mxu0 0.0
  %169 = vmatpush1.msra.mxu0 0.0
  %170 = vmatprep.subr.mxu0 0.0
  %171 = vmatpush1.msra.mxu0 0.0
  %172 = vmatprep.subr.mxu0 0.0
  %173 = vmatpush1.msra.mxu0 0.0
  %174 = vmatprep.subr.mxu0 0.0
  %175 = vmatpush1.msra.mxu0 0.0
  %176 = vmatprep.subr.mxu0 0.0
  %177 = vmatpush1.msra.mxu0 0.0
  %178 = vmatprep.subr.mxu0 0.0
  %179 = vmatpush1.msra.mxu0 0.0
  %180 = vmatprep.subr.mxu0 0.0
  %181 = vmatpush1.msra.mxu0 0.0
  %182 = vmatprep.subr.mxu0 0.0
  %183 = vmatpush1.msra.mxu0 0.0
  %184 = vmatprep.subr.mxu0 0.0
  %185 = vmatpush1.msra.mxu0 0.0
  %186 = vmatprep.subr.mxu0 0.0
  %187 = vmatpush1.msra.mxu0 0.0
  %188 = vmatprep.subr.mxu0 0.0
  %189 = vmatpush1.msra.mxu0 0.0
  %190 = vmatprep.subr.mxu0 0.0
  %191 = vmatpush1.msra.mxu0 0.0
  %192 = vmatprep.subr.mxu0 0.0
  %193 = vmatpush1.msra.mxu0 0.0
  %194 = vmatprep.subr.mxu0 0.0
  %195 = vmatpush1.msra.mxu0 0.0
  %196 = vmatprep.subr.mxu0 0.0
  %197 = vmatpush1.msra.mxu0 0.0
  %198 = vmatprep.subr.mxu0 0.0
  %199 = vmatpush1.msra.mxu0 0.0
  %200 = vmatprep.subr.mxu0 0.0
  %201 = vmatpush1.msra.mxu0 0.0
  %202 = vmatprep.subr.mxu0 0.0
  %203 = vmatpush1.msra.mxu0 0.0
  %204 = vmatprep.subr.mxu0 0.0
  %205 = vmatpush1.msra.mxu0 0.0
  %206 = vmatprep.mubr.f32.mxu0 0.0
  %207 = vmatmul.mubr.f32.gmra.mrb[0].mxu0 %v137
  %v208 = vpop.f32.mrb[0].mxu0
  %v209 = vadd.f32 %v134, %v208
  %v210 = vpop.f32.mrb[0].mxu0
  %211 = vmatprep.mubr.f32.mxu0 0.0
  %212 = vmatmul.mubr.f32.gmra.mrb[0].mxu0 %v140
  %v213 = vpop.f32.mrb[0].mxu0
  %v214 = vadd.f32 %v134, %v213
  %v215 = vpop.f32.mrb[0].mxu0
  %216 = vdwg.mxu0
  %v217 = vmax.f32 %v209, 0.0
  %v218 = vmax.f32 %v214, 0.0
  %219 = vst.msk [vmem:[#allocation2] sm:$0xff] %vm135, %v217
  %220 = vst.msk [vmem:[#allocation2 + $0x8] sm:$0xff] %vm135, %v218
  %v221 = vld [vmem:[%s3 + $0x2] sm:$0x1]
  %v222 = vld [vmem:[#allocation2] ss:$2 sm:$0xff]
  %v223 = vld [vmem:[%s2 + $0x80] sm:$0xff]
  %v224 = vld [vmem:[%s2 + $0x88] sm:$0xff]
  %v225 = vld [vmem:[%s2 + $0x90] sm:$0xff]
  %v226 = vld [vmem:[%s2 + $0x98] sm:$0xff]
  %v228 = vsel %vm135, %v222, 0
  %230 = vmatprep.subr.mxu0 0.0
  %231 = vmatpush1.msra.mxu0 %v223
  %232 = vmatprep.subr.mxu0 0.0
  %233 = vmatpush1.msra.mxu0 %v224
  %234 = vmatprep.subr.mxu0 0.0
  %235 = vmatpush1.msra.mxu0 %v225
  %236 = vmatprep.subr.mxu0 0.0
  %237 = vmatpush1.msra.mxu0 %v226
  %238 = vmatprep.subr.mxu0 0.0
  %239 = vmatpush1.msra.mxu0 0.0
  %240 = vmatprep.subr.mxu0 0.0
  %241 = vmatpush1.msra.mxu0 0.0
  %242 = vmatprep.subr.mxu0 0.0
  %243 = vmatpush1.msra.mxu0 0.0
  %244 = vmatprep.subr.mxu0 0.0
  %245 = vmatpush1.msra.mxu0 0.0
  %246 = vmatprep.subr.mxu0 0.0
  %247 = vmatpush1.msra.mxu0 0.0
  %248 = vmatprep.subr.mxu0 0.0
  %249 = vmatpush1.msra.mxu0 0.0
  %250 = vmatprep.subr.mxu0 0.0
  %251 = vmatpush1.msra.mxu0 0.0
  %252 = vmatprep.subr.mxu0 0.0
  %253 = vmatpush1.msra.mxu0 0.0
  %254 = vmatprep.subr.mxu0 0.0
  %255 = vmatpush1.msra.mxu0 0.0
  %256 = vmatprep.subr.mxu0 0.0
  %257 = vmatpush1.msra.mxu0 0.0
  %258 = vmatprep.subr.mxu0 0.0
  %259 = vmatpush1.msra.mxu0 0.0
  %260 = vmatprep.subr.mxu0 0.0
  %261 = vmatpush1.msra.mxu0 0.0
  %262 = vmatprep.subr.mxu0 0.0
  %263 = vmatpush1.msra.mxu0 0.0
  %264 = vmatprep.subr.mxu0 0.0
  %265 = vmatpush1.msra.mxu0 0.0
  %266 = vmatprep.subr.mxu0 0.0
  %267 = vmatpush1.msra.mxu0 0.0
  %268 = vmatprep.subr.mxu0 0.0
  %269 = vmatpush1.msra.mxu0 0.0
  %270 = vmatprep.subr.mxu0 0.0
  %271 = vmatpush1.msra.mxu0 0.0
  %272 = vmatprep.subr.mxu0 0.0
  %273 = vmatpush1.msra.mxu0 0.0
  %274 = vmatprep.subr.mxu0 0.0
  %275 = vmatpush1.msra.mxu0 0.0
  %276 = vmatprep.subr.mxu0 0.0
  %277 = vmatpush1.msra.mxu0 0.0
  %278 = vmatprep.subr.mxu0 0.0
  %279 = vmatpush1.msra.mxu0 0.0
  %280 = vmatprep.subr.mxu0 0.0
  %281 = vmatpush1.msra.mxu0 0.0
  %282 = vmatprep.subr.mxu0 0.0
  %283 = vmatpush1.msra.mxu0 0.0
  %284 = vmatprep.subr.mxu0 0.0
  %285 = vmatpush1.msra.mxu0 0.0
  %286 = vmatprep.subr.mxu0 0.0
  %287 = vmatpush1.msra.mxu0 0.0
  %288 = vmatprep.subr.mxu0 0.0
  %289 = vmatpush1.msra.mxu0 0.0
  %290 = vmatprep.subr.mxu0 0.0
  %291 = vmatpush1.msra.mxu0 0.0
  %292 = vmatprep.subr.mxu0 0.0
  %293 = vmatpush1.msra.mxu0 0.0
  %294 = vmatprep.mubr.f32.mxu0 0.0
  %295 = vmatmul.mubr.f32.gmra.mrb[0].mxu0 %v228
  %v296 = vpop.f32.mrb[0].mxu0
  %v297 = vadd.f32 0.0, %v296
  %v298 = vpop.f32.mrb[0].mxu0
  %299 = vdwg.mxu0
  %v300 = vlaneseq
  %v301 = vshrl.u32 %v300, 7
  %v302 = vsub.s32 0, %v301
  %v303 = vrot.slane %v221, %v302
  %v304 = vadd.f32 %v303, %v297
  %s305 = scalar_lea.vmem [#allocation2], 1
  %v306 = vld [vmem:[%s305] ss:$2 sm:$0xff]
  %v307 = vld [vmem:[%s2 + $0xa0] sm:$0xff]
  %v308 = vld [vmem:[%s2 + $0xa8] sm:$0xff]
  %v309 = vld [vmem:[%s2 + $0xb0] sm:$0xff]
  %v310 = vld [vmem:[%s2 + $0xb8] sm:$0xff]
  %v312 = vsel %vm135, %v306, 0
  %314 = vmatprep.subr.mxu0 0.0
  %315 = vmatpush1.msra.mxu0 %v307
  %316 = vmatprep.subr.mxu0 0.0
  %317 = vmatpush1.msra.mxu0 %v308
  %318 = vmatprep.subr.mxu0 0.0
  %319 = vmatpush1.msra.mxu0 %v309
  %320 = vmatprep.subr.mxu0 0.0
  %321 = vmatpush1.msra.mxu0 %v310
  %322 = vmatprep.subr.mxu0 0.0
  %323 = vmatpush1.msra.mxu0 0.0
  %324 = vmatprep.subr.mxu0 0.0
  %325 = vmatpush1.msra.mxu0 0.0
  %326 = vmatprep.subr.mxu0 0.0
  %327 = vmatpush1.msra.mxu0 0.0
  %328 = vmatprep.subr.mxu0 0.0
  %329 = vmatpush1.msra.mxu0 0.0
  %330 = vmatprep.subr.mxu0 0.0
  %331 = vmatpush1.msra.mxu0 0.0
  %332 = vmatprep.subr.mxu0 0.0
  %333 = vmatpush1.msra.mxu0 0.0
  %334 = vmatprep.subr.mxu0 0.0
  %335 = vmatpush1.msra.mxu0 0.0
  %336 = vmatprep.subr.mxu0 0.0
  %337 = vmatpush1.msra.mxu0 0.0
  %338 = vmatprep.subr.mxu0 0.0
  %339 = vmatpush1.msra.mxu0 0.0
  %340 = vmatprep.subr.mxu0 0.0
  %341 = vmatpush1.msra.mxu0 0.0
  %342 = vmatprep.subr.mxu0 0.0
  %343 = vmatpush1.msra.mxu0 0.0
  %344 = vmatprep.subr.mxu0 0.0
  %345 = vmatpush1.msra.mxu0 0.0
  %346 = vmatprep.subr.mxu0 0.0
  %347 = vmatpush1.msra.mxu0 0.0
  %348 = vmatprep.subr.mxu0 0.0
  %349 = vmatpush1.msra.mxu0 0.0
  %350 = vmatprep.subr.mxu0 0.0
  %351 = vmatpush1.msra.mxu0 0.0
  %352 = vmatprep.subr.mxu0 0.0
  %353 = vmatpush1.msra.mxu0 0.0
  %354 = vmatprep.subr.mxu0 0.0
  %355 = vmatpush1.msra.mxu0 0.0
  %356 = vmatprep.subr.mxu0 0.0
  %357 = vmatpush1.msra.mxu0 0.0
  %358 = vmatprep.subr.mxu0 0.0
  %359 = vmatpush1.msra.mxu0 0.0
  %360 = vmatprep.subr.mxu0 0.0
  %361 = vmatpush1.msra.mxu0 0.0
  %362 = vmatprep.subr.mxu0 0.0
  %363 = vmatpush1.msra.mxu0 0.0
  %364 = vmatprep.subr.mxu0 0.0
  %365 = vmatpush1.msra.mxu0 0.0
  %366 = vmatprep.subr.mxu0 0.0
  %367 = vmatpush1.msra.mxu0 0.0
  %368 = vmatprep.subr.mxu0 0.0
  %369 = vmatpush1.msra.mxu0 0.0
  %370 = vmatprep.subr.mxu0 0.0
  %371 = vmatpush1.msra.mxu0 0.0
  %372 = vmatprep.subr.mxu0 0.0
  %373 = vmatpush1.msra.mxu0 0.0
  %374 = vmatprep.subr.mxu0 0.0
  %375 = vmatpush1.msra.mxu0 0.0
  %376 = vmatprep.subr.mxu0 0.0
  %377 = vmatpush1.msra.mxu0 0.0
  %378 = vmatprep.mubr.f32.mxu0 0.0
  %379 = vmatmul.mubr.f32.gmra.mrb[0].mxu0 %v312
  %v380 = vpop.f32.mrb[0].mxu0
  %v381 = vadd.f32 0.0, %v380
  %v382 = vpop.f32.mrb[0].mxu0
  %383 = vdwg.mxu0
  %v384 = vadd.f32 %v304, %v381
  %v385 = vmax.f32 %v384, 0.0
  %v386 = vld [vmem:[%s2 + $0xc0] sm:$0xff]
  %v387 = vld [vmem:[%s2 + $0xc8] sm:$0xff]
  %v388 = vld [vmem:[%s2 + $0xd0] sm:$0xff]
  %v389 = vld [vmem:[%s2 + $0xd8] sm:$0xff]
  %v390 = vld [vmem:[%s3 + $0x3] sm:$0x1]
  %v391 = vlaneseq
  %v392 = vshrl.u32 %v391, 7
  %v393 = vsub.s32 0, %v392
  %v394 = vrot.slane %v390, %v393
  %v396 = vsel %vm135, %v385, 0
  %398 = vmatprep.subr.mxu0 0.0
  %399 = vmatpush1.msra.mxu0 %v386
  %400 = vmatprep.subr.mxu0 0.0
  %401 = vmatpush1.msra.mxu0 %v387
  %402 = vmatprep.subr.mxu0 0.0
  %403 = vmatpush1.msra.mxu0 %v388
  %404 = vmatprep.subr.mxu0 0.0
  %405 = vmatpush1.msra.mxu0 %v389
  %406 = vmatprep.subr.mxu0 0.0
  %407 = vmatpush1.msra.mxu0 0.0
  %408 = vmatprep.subr.mxu0 0.0
  %409 = vmatpush1.msra.mxu0 0.0
  %410 = vmatprep.subr.mxu0 0.0
  %411 = vmatpush1.msra.mxu0 0.0
  %412 = vmatprep.subr.mxu0 0.0
  %413 = vmatpush1.msra.mxu0 0.0
  %414 = vmatprep.subr.mxu0 0.0
  %415 = vmatpush1.msra.mxu0 0.0
  %416 = vmatprep.subr.mxu0 0.0
  %417 = vmatpush1.msra.mxu0 0.0
  %418 = vmatprep.subr.mxu0 0.0
  %419 = vmatpush1.msra.mxu0 0.0
  %420 = vmatprep.subr.mxu0 0.0
  %421 = vmatpush1.msra.mxu0 0.0
  %422 = vmatprep.subr.mxu0 0.0
  %423 = vmatpush1.msra.mxu0 0.0
  %424 = vmatprep.subr.mxu0 0.0
  %425 = vmatpush1.msra.mxu0 0.0
  %426 = vmatprep.subr.mxu0 0.0
  %427 = vmatpush1.msra.mxu0 0.0
  %428 = vmatprep.subr.mxu0 0.0
  %429 = vmatpush1.msra.mxu0 0.0
  %430 = vmatprep.subr.mxu0 0.0
  %431 = vmatpush1.msra.mxu0 0.0
  %432 = vmatprep.subr.mxu0 0.0
  %433 = vmatpush1.msra.mxu0 0.0
  %434 = vmatprep.subr.mxu0 0.0
  %435 = vmatpush1.msra.mxu0 0.0
  %436 = vmatprep.subr.mxu0 0.0
  %437 = vmatpush1.msra.mxu0 0.0
  %438 = vmatprep.subr.mxu0 0.0
  %439 = vmatpush1.msra.mxu0 0.0
  %440 = vmatprep.subr.mxu0 0.0
  %441 = vmatpush1.msra.mxu0 0.0
  %442 = vmatprep.subr.mxu0 0.0
  %443 = vmatpush1.msra.mxu0 0.0
  %444 = vmatprep.subr.mxu0 0.0
  %445 = vmatpush1.msra.mxu0 0.0
  %446 = vmatprep.subr.mxu0 0.0
  %447 = vmatpush1.msra.mxu0 0.0
  %448 = vmatprep.subr.mxu0 0.0
  %449 = vmatpush1.msra.mxu0 0.0
  %450 = vmatprep.subr.mxu0 0.0
  %451 = vmatpush1.msra.mxu0 0.0
  %452 = vmatprep.subr.mxu0 0.0
  %453 = vmatpush1.msra.mxu0 0.0
  %454 = vmatprep.subr.mxu0 0.0
  %455 = vmatpush1.msra.mxu0 0.0
  %456 = vmatprep.subr.mxu0 0.0
  %457 = vmatpush1.msra.mxu0 0.0
  %458 = vmatprep.subr.mxu0 0.0
  %459 = vmatpush1.msra.mxu0 0.0
  %460 = vmatprep.subr.mxu0 0.0
  %461 = vmatpush1.msra.mxu0 0.0
  %462 = vmatprep.mubr.f32.mxu0 0.0
  %463 = vmatmul.mubr.f32.gmra.mrb[0].mxu0 %v396
  %v464 = vpop.f32.mrb[0].mxu0
  %v465 = vadd.f32 %v394, %v464
  %v466 = vpop.f32.mrb[0].mxu0
  %467 = vdwg.mxu0
  %v468 = vmax.f32 %v465, 0.0
  %v469 = vld [vmem:[%s1] sm:$0xff]
  %v470 = vld [vmem:[%s2 + $0xe0] sm:$0xff]
  %v471 = vld [vmem:[%s2 + $0xe8] sm:$0xff]
  %v472 = vld [vmem:[%s3 + $0x4] sm:$0x1]
  %v473 = vlaneseq
  %v474 = vshrl.u32 %v473, 7
  %v475 = vsub.s32 0, %v474
  %v476 = vrot.slane %v472, %v475
  %vm477 = vcmask 130048
  %v479 = vsel %vm477, %v469, 0
  %481 = vmatprep.subr.mxu0 0.0
  %482 = vmatpush1.msra.mxu0 %v470
  %483 = vmatprep.subr.mxu0 0.0
  %484 = vmatpush1.msra.mxu0 %v471
  %485 = vmatprep.subr.mxu0 0.0
  %486 = vmatpush1.msra.mxu0 0.0
  %487 = vmatprep.subr.mxu0 0.0
  %488 = vmatpush1.msra.mxu0 0.0
  %489 = vmatprep.subr.mxu0 0.0
  %490 = vmatpush1.msra.mxu0 0.0
  %491 = vmatprep.subr.mxu0 0.0
  %492 = vmatpush1.msra.mxu0 0.0
  %493 = vmatprep.subr.mxu0 0.0
  %494 = vmatpush1.msra.mxu0 0.0
  %495 = vmatprep.subr.mxu0 0.0
  %496 = vmatpush1.msra.mxu0 0.0
  %497 = vmatprep.subr.mxu0 0.0
  %498 = vmatpush1.msra.mxu0 0.0
  %499 = vmatprep.subr.mxu0 0.0
  %500 = vmatpush1.msra.mxu0 0.0
  %501 = vmatprep.subr.mxu0 0.0
  %502 = vmatpush1.msra.mxu0 0.0
  %503 = vmatprep.subr.mxu0 0.0
  %504 = vmatpush1.msra.mxu0 0.0
  %505 = vmatprep.subr.mxu0 0.0
  %506 = vmatpush1.msra.mxu0 0.0
  %507 = vmatprep.subr.mxu0 0.0
  %508 = vmatpush1.msra.mxu0 0.0
  %509 = vmatprep.subr.mxu0 0.0
  %510 = vmatpush1.msra.mxu0 0.0
  %511 = vmatprep.subr.mxu0 0.0
  %512 = vmatpush1.msra.mxu0 0.0
  %513 = vmatprep.subr.mxu0 0.0
  %514 = vmatpush1.msra.mxu0 0.0
  %515 = vmatprep.subr.mxu0 0.0
  %516 = vmatpush1.msra.mxu0 0.0
  %517 = vmatprep.subr.mxu0 0.0
  %518 = vmatpush1.msra.mxu0 0.0
  %519 = vmatprep.subr.mxu0 0.0
  %520 = vmatpush1.msra.mxu0 0.0
  %521 = vmatprep.subr.mxu0 0.0
  %522 = vmatpush1.msra.mxu0 0.0
  %523 = vmatprep.subr.mxu0 0.0
  %524 = vmatpush1.msra.mxu0 0.0
  %525 = vmatprep.subr.mxu0 0.0
  %526 = vmatpush1.msra.mxu0 0.0
  %527 = vmatprep.subr.mxu0 0.0
  %528 = vmatpush1.msra.mxu0 0.0
  %529 = vmatprep.subr.mxu0 0.0
  %530 = vmatpush1.msra.mxu0 0.0
  %531 = vmatprep.subr.mxu0 0.0
  %532 = vmatpush1.msra.mxu0 0.0
  %533 = vmatprep.subr.mxu0 0.0
  %534 = vmatpush1.msra.mxu0 0.0
  %535 = vmatprep.subr.mxu0 0.0
  %536 = vmatpush1.msra.mxu0 0.0
  %537 = vmatprep.subr.mxu0 0.0
  %538 = vmatpush1.msra.mxu0 0.0
  %539 = vmatprep.subr.mxu0 0.0
  %540 = vmatpush1.msra.mxu0 0.0
  %541 = vmatprep.subr.mxu0 0.0
  %542 = vmatpush1.msra.mxu0 0.0
  %543 = vmatprep.subr.mxu0 0.0
  %544 = vmatpush1.msra.mxu0 0.0
  %545 = vmatprep.mubr.f32.mxu0 0.0
  %546 = vmatmul.mubr.f32.gmra.mrb[0].mxu0 %v479
  %v547 = vpop.f32.mrb[0].mxu0
  %v548 = vadd.f32 %v476, %v547
  %v549 = vpop.f32.mrb[0].mxu0
  %550 = vdwg.mxu0
  %v551 = vmax.f32 %v548, 0.0
  %v552 = vld [vmem:[%s2 + $0xf0] sm:$0xff]
  %v553 = vld [vmem:[%s2 + $0xf8] sm:$0xff]
  %v554 = vld [vmem:[%s2 + $0x100] sm:$0xff]
  %v555 = vld [vmem:[%s2 + $0x108] sm:$0xff]
  %v556 = vld [vmem:[%s3 + $0x5] sm:$0x1]
  %v557 = vlaneseq
  %v558 = vshrl.u32 %v557, 7
  %v559 = vsub.s32 0, %v558
  %v560 = vrot.slane %v556, %v559
  %v562 = vsel %vm135, %v551, 0
  %564 = vmatprep.subr.mxu0 0.0
  %565 = vmatpush1.msra.mxu0 %v552
  %566 = vmatprep.subr.mxu0 0.0
  %567 = vmatpush1.msra.mxu0 %v553
  %568 = vmatprep.subr.mxu0 0.0
  %569 = vmatpush1.msra.mxu0 %v554
  %570 = vmatprep.subr.mxu0 0.0
  %571 = vmatpush1.msra.mxu0 %v555
  %572 = vmatprep.subr.mxu0 0.0
  %573 = vmatpush1.msra.mxu0 0.0
  %574 = vmatprep.subr.mxu0 0.0
  %575 = vmatpush1.msra.mxu0 0.0
  %576 = vmatprep.subr.mxu0 0.0
  %577 = vmatpush1.msra.mxu0 0.0
  %578 = vmatprep.subr.mxu0 0.0
  %579 = vmatpush1.msra.mxu0 0.0
  %580 = vmatprep.subr.mxu0 0.0
  %581 = vmatpush1.msra.mxu0 0.0
  %582 = vmatprep.subr.mxu0 0.0
  %583 = vmatpush1.msra.mxu0 0.0
  %584 = vmatprep.subr.mxu0 0.0
  %585 = vmatpush1.msra.mxu0 0.0
  %586 = vmatprep.subr.mxu0 0.0
  %587 = vmatpush1.msra.mxu0 0.0
  %588 = vmatprep.subr.mxu0 0.0
  %589 = vmatpush1.msra.mxu0 0.0
  %590 = vmatprep.subr.mxu0 0.0
  %591 = vmatpush1.msra.mxu0 0.0
  %592 = vmatprep.subr.mxu0 0.0
  %593 = vmatpush1.msra.mxu0 0.0
  %594 = vmatprep.subr.mxu0 0.0
  %595 = vmatpush1.msra.mxu0 0.0
  %596 = vmatprep.subr.mxu0 0.0
  %597 = vmatpush1.msra.mxu0 0.0
  %598 = vmatprep.subr.mxu0 0.0
  %599 = vmatpush1.msra.mxu0 0.0
  %600 = vmatprep.subr.mxu0 0.0
  %601 = vmatpush1.msra.mxu0 0.0
  %602 = vmatprep.subr.mxu0 0.0
  %603 = vmatpush1.msra.mxu0 0.0
  %604 = vmatprep.subr.mxu0 0.0
  %605 = vmatpush1.msra.mxu0 0.0
  %606 = vmatprep.subr.mxu0 0.0
  %607 = vmatpush1.msra.mxu0 0.0
  %608 = vmatprep.subr.mxu0 0.0
  %609 = vmatpush1.msra.mxu0 0.0
  %610 = vmatprep.subr.mxu0 0.0
  %611 = vmatpush1.msra.mxu0 0.0
  %612 = vmatprep.subr.mxu0 0.0
  %613 = vmatpush1.msra.mxu0 0.0
  %614 = vmatprep.subr.mxu0 0.0
  %615 = vmatpush1.msra.mxu0 0.0
  %616 = vmatprep.subr.mxu0 0.0
  %617 = vmatpush1.msra.mxu0 0.0
  %618 = vmatprep.subr.mxu0 0.0
  %619 = vmatpush1.msra.mxu0 0.0
  %620 = vmatprep.subr.mxu0 0.0
  %621 = vmatpush1.msra.mxu0 0.0
  %622 = vmatprep.subr.mxu0 0.0
  %623 = vmatpush1.msra.mxu0 0.0
  %624 = vmatprep.subr.mxu0 0.0
  %625 = vmatpush1.msra.mxu0 0.0
  %626 = vmatprep.subr.mxu0 0.0
  %627 = vmatpush1.msra.mxu0 0.0
  %628 = vmatprep.mubr.f32.mxu0 0.0
  %629 = vmatmul.mubr.f32.gmra.mrb[0].mxu0 %v562
  %v630 = vpop.f32.mrb[0].mxu0
  %v631 = vadd.f32 %v560, %v630
  %v632 = vpop.f32.mrb[0].mxu0
  %633 = vdwg.mxu0
  %v634 = vmax.f32 %v631, 0.0
  %v635 = vld [vmem:[%s2 + $0x110] sm:$0xff]
  %v636 = vld [vmem:[%s2 + $0x118] sm:$0xff]
  %v637 = vld [vmem:[%s2 + $0x120] sm:$0xff]
  %v638 = vld [vmem:[%s2 + $0x128] sm:$0xff]
  %v639 = vld [vmem:[%s2 + $0x130] sm:$0xff]
  %v640 = vld [vmem:[%s2 + $0x138] sm:$0xff]
  %v641 = vld [vmem:[%s2 + $0x140] sm:$0xff]
  %v642 = vld [vmem:[%s2 + $0x148] sm:$0xff]
  %v644 = vsel %vm135, %v634, 0
  %646 = vmatprep.subr.mxu0 0.0
  %647 = vmatpush1.msra.mxu0 %v639
  %648 = vmatprep.subr.mxu0 0.0
  %649 = vmatpush1.msra.mxu0 %v640
  %650 = vmatprep.subr.mxu0 0.0
  %651 = vmatpush1.msra.mxu0 %v641
  %652 = vmatprep.subr.mxu0 0.0
  %653 = vmatpush1.msra.mxu0 %v642
  %654 = vmatprep.subr.mxu0 0.0
  %655 = vmatpush1.msra.mxu0 0.0
  %656 = vmatprep.subr.mxu0 0.0
  %657 = vmatpush1.msra.mxu0 0.0
  %658 = vmatprep.subr.mxu0 0.0
  %659 = vmatpush1.msra.mxu0 0.0
  %660 = vmatprep.subr.mxu0 0.0
  %661 = vmatpush1.msra.mxu0 0.0
  %662 = vmatprep.subr.mxu0 0.0
  %663 = vmatpush1.msra.mxu0 0.0
  %664 = vmatprep.subr.mxu0 0.0
  %665 = vmatpush1.msra.mxu0 0.0
  %666 = vmatprep.subr.mxu0 0.0
  %667 = vmatpush1.msra.mxu0 0.0
  %668 = vmatprep.subr.mxu0 0.0
  %669 = vmatpush1.msra.mxu0 0.0
  %670 = vmatprep.subr.mxu0 0.0
  %671 = vmatpush1.msra.mxu0 0.0
  %672 = vmatprep.subr.mxu0 0.0
  %673 = vmatpush1.msra.mxu0 0.0
  %674 = vmatprep.subr.mxu0 0.0
  %675 = vmatpush1.msra.mxu0 0.0
  %676 = vmatprep.subr.mxu0 0.0
  %677 = vmatpush1.msra.mxu0 0.0
  %678 = vmatprep.subr.mxu0 0.0
  %679 = vmatpush1.msra.mxu0 0.0
  %680 = vmatprep.subr.mxu0 0.0
  %681 = vmatpush1.msra.mxu0 0.0
  %682 = vmatprep.subr.mxu0 0.0
  %683 = vmatpush1.msra.mxu0 0.0
  %684 = vmatprep.subr.mxu0 0.0
  %685 = vmatpush1.msra.mxu0 0.0
  %686 = vmatprep.subr.mxu0 0.0
  %687 = vmatpush1.msra.mxu0 0.0
  %688 = vmatprep.subr.mxu0 0.0
  %689 = vmatpush1.msra.mxu0 0.0
  %690 = vmatprep.subr.mxu0 0.0
  %691 = vmatpush1.msra.mxu0 0.0
  %692 = vmatprep.subr.mxu0 0.0
  %693 = vmatpush1.msra.mxu0 0.0
  %694 = vmatprep.subr.mxu0 0.0
  %695 = vmatpush1.msra.mxu0 0.0
  %696 = vmatprep.subr.mxu0 0.0
  %697 = vmatpush1.msra.mxu0 0.0
  %698 = vmatprep.subr.mxu0 0.0
  %699 = vmatpush1.msra.mxu0 0.0
  %700 = vmatprep.subr.mxu0 0.0
  %701 = vmatpush1.msra.mxu0 0.0
  %702 = vmatprep.subr.mxu0 0.0
  %703 = vmatpush1.msra.mxu0 0.0
  %704 = vmatprep.subr.mxu0 0.0
  %705 = vmatpush1.msra.mxu0 0.0
  %706 = vmatprep.subr.mxu0 0.0
  %707 = vmatpush1.msra.mxu0 0.0
  %708 = vmatprep.subr.mxu0 0.0
  %709 = vmatpush1.msra.mxu0 0.0
  %710 = vmatprep.mubr.f32.mxu0 0.0
  %711 = vmatmul.mubr.f32.gmra.mrb[0].mxu0 %v644
  %v712 = vpop.f32.mrb[0].mxu0
  %v713 = vadd.f32 0.0, %v712
  %v714 = vpop.f32.mrb[0].mxu0
  %715 = vdwg.mxu0
  %v717 = vsel %vm135, %v468, 0
  %719 = vmatprep.subr.mxu0 0.0
  %720 = vmatpush1.msra.mxu0 %v635
  %721 = vmatprep.subr.mxu0 0.0
  %722 = vmatpush1.msra.mxu0 %v636
  %723 = vmatprep.subr.mxu0 0.0
  %724 = vmatpush1.msra.mxu0 %v637
  %725 = vmatprep.subr.mxu0 0.0
  %726 = vmatpush1.msra.mxu0 %v638
  %727 = vmatprep.subr.mxu0 0.0
  %728 = vmatpush1.msra.mxu0 0.0
  %729 = vmatprep.subr.mxu0 0.0
  %730 = vmatpush1.msra.mxu0 0.0
  %731 = vmatprep.subr.mxu0 0.0
  %732 = vmatpush1.msra.mxu0 0.0
  %733 = vmatprep.subr.mxu0 0.0
  %734 = vmatpush1.msra.mxu0 0.0
  %735 = vmatprep.subr.mxu0 0.0
  %736 = vmatpush1.msra.mxu0 0.0
  %737 = vmatprep.subr.mxu0 0.0
  %738 = vmatpush1.msra.mxu0 0.0
  %739 = vmatprep.subr.mxu0 0.0
  %740 = vmatpush1.msra.mxu0 0.0
  %741 = vmatprep.subr.mxu0 0.0
  %742 = vmatpush1.msra.mxu0 0.0
  %743 = vmatprep.subr.mxu0 0.0
  %744 = vmatpush1.msra.mxu0 0.0
  %745 = vmatprep.subr.mxu0 0.0
  %746 = vmatpush1.msra.mxu0 0.0
  %747 = vmatprep.subr.mxu0 0.0
  %748 = vmatpush1.msra.mxu0 0.0
  %749 = vmatprep.subr.mxu0 0.0
  %750 = vmatpush1.msra.mxu0 0.0
  %751 = vmatprep.subr.mxu0 0.0
  %752 = vmatpush1.msra.mxu0 0.0
  %753 = vmatprep.subr.mxu0 0.0
  %754 = vmatpush1.msra.mxu0 0.0
  %755 = vmatprep.subr.mxu0 0.0
  %756 = vmatpush1.msra.mxu0 0.0
  %757 = vmatprep.subr.mxu0 0.0
  %758 = vmatpush1.msra.mxu0 0.0
  %759 = vmatprep.subr.mxu0 0.0
  %760 = vmatpush1.msra.mxu0 0.0
  %761 = vmatprep.subr.mxu0 0.0
  %762 = vmatpush1.msra.mxu0 0.0
  %763 = vmatprep.subr.mxu0 0.0
  %764 = vmatpush1.msra.mxu0 0.0
  %765 = vmatprep.subr.mxu0 0.0
  %766 = vmatpush1.msra.mxu0 0.0
  %767 = vmatprep.subr.mxu0 0.0
  %768 = vmatpush1.msra.mxu0 0.0
  %769 = vmatprep.subr.mxu0 0.0
  %770 = vmatpush1.msra.mxu0 0.0
  %771 = vmatprep.subr.mxu0 0.0
  %772 = vmatpush1.msra.mxu0 0.0
  %773 = vmatprep.subr.mxu0 0.0
  %774 = vmatpush1.msra.mxu0 0.0
  %775 = vmatprep.subr.mxu0 0.0
  %776 = vmatpush1.msra.mxu0 0.0
  %777 = vmatprep.subr.mxu0 0.0
  %778 = vmatpush1.msra.mxu0 0.0
  %779 = vmatprep.subr.mxu0 0.0
  %780 = vmatpush1.msra.mxu0 0.0
  %781 = vmatprep.subr.mxu0 0.0
  %782 = vmatpush1.msra.mxu0 0.0
  %783 = vmatprep.mubr.f32.mxu0 0.0
  %784 = vmatmul.mubr.f32.gmra.mrb[0].mxu0 %v717
  %v785 = vpop.f32.mrb[0].mxu0
  %v786 = vadd.f32 %v713, %v785
  %v787 = vpop.f32.mrb[0].mxu0
  %788 = vdwg.mxu0
  %v789 = vld [vmem:[%s3 + $0x6] sm:$0x1]
  %v790 = vlaneseq
  %v791 = vshrl.u32 %v790, 7
  %v792 = vsub.s32 0, %v791
  %v793 = vrot.slane %v789, %v792
  %v794 = vadd.f32 %v786, %v793
  %v795 = vmax.f32 %v794, 0.0
  %v796 = vld [vmem:[%s2 + $0x150] sm:$0xff]
  %v797 = vld [vmem:[%s2 + $0x158] sm:$0xff]
  %v798 = vld [vmem:[%s2 + $0x160] sm:$0xff]
  %v799 = vld [vmem:[%s2 + $0x168] sm:$0xff]
  %v800 = vld [vmem:[%s3 + $0x7] sm:$0x1]
  %v801 = vlaneseq
  %v802 = vshrl.u32 %v801, 7
  %v803 = vsub.s32 0, %v802
  %v804 = vrot.slane %v800, %v803
  %v806 = vsel %vm135, %v795, 0
  %808 = vmatprep.subr.mxu0 0.0
  %809 = vmatpush1.msra.mxu0 %v796
  %810 = vmatprep.subr.mxu0 0.0
  %811 = vmatpush1.msra.mxu0 %v797
  %812 = vmatprep.subr.mxu0 0.0
  %813 = vmatpush1.msra.mxu0 %v798
  %814 = vmatprep.subr.mxu0 0.0
  %815 = vmatpush1.msra.mxu0 %v799
  %816 = vmatprep.subr.mxu0 0.0
  %817 = vmatpush1.msra.mxu0 0.0
  %818 = vmatprep.subr.mxu0 0.0
  %819 = vmatpush1.msra.mxu0 0.0
  %820 = vmatprep.subr.mxu0 0.0
  %821 = vmatpush1.msra.mxu0 0.0
  %822 = vmatprep.subr.mxu0 0.0
  %823 = vmatpush1.msra.mxu0 0.0
  %824 = vmatprep.subr.mxu0 0.0
  %825 = vmatpush1.msra.mxu0 0.0
  %826 = vmatprep.subr.mxu0 0.0
  %827 = vmatpush1.msra.mxu0 0.0
  %828 = vmatprep.subr.mxu0 0.0
  %829 = vmatpush1.msra.mxu0 0.0
  %830 = vmatprep.subr.mxu0 0.0
  %831 = vmatpush1.msra.mxu0 0.0
  %832 = vmatprep.subr.mxu0 0.0
  %833 = vmatpush1.msra.mxu0 0.0
  %834 = vmatprep.subr.mxu0 0.0
  %835 = vmatpush1.msra.mxu0 0.0
  %836 = vmatprep.subr.mxu0 0.0
  %837 = vmatpush1.msra.mxu0 0.0
  %838 = vmatprep.subr.mxu0 0.0
  %839 = vmatpush1.msra.mxu0 0.0
  %840 = vmatprep.subr.mxu0 0.0
  %841 = vmatpush1.msra.mxu0 0.0
  %842 = vmatprep.subr.mxu0 0.0
  %843 = vmatpush1.msra.mxu0 0.0
  %844 = vmatprep.subr.mxu0 0.0
  %845 = vmatpush1.msra.mxu0 0.0
  %846 = vmatprep.subr.mxu0 0.0
  %847 = vmatpush1.msra.mxu0 0.0
  %848 = vmatprep.subr.mxu0 0.0
  %849 = vmatpush1.msra.mxu0 0.0
  %850 = vmatprep.subr.mxu0 0.0
  %851 = vmatpush1.msra.mxu0 0.0
  %852 = vmatprep.subr.mxu0 0.0
  %853 = vmatpush1.msra.mxu0 0.0
  %854 = vmatprep.subr.mxu0 0.0
  %855 = vmatpush1.msra.mxu0 0.0
  %856 = vmatprep.subr.mxu0 0.0
  %857 = vmatpush1.msra.mxu0 0.0
  %858 = vmatprep.subr.mxu0 0.0
  %859 = vmatpush1.msra.mxu0 0.0
  %860 = vmatprep.subr.mxu0 0.0
  %861 = vmatpush1.msra.mxu0 0.0
  %862 = vmatprep.subr.mxu0 0.0
  %863 = vmatpush1.msra.mxu0 0.0
  %864 = vmatprep.subr.mxu0 0.0
  %865 = vmatpush1.msra.mxu0 0.0
  %866 = vmatprep.subr.mxu0 0.0
  %867 = vmatpush1.msra.mxu0 0.0
  %868 = vmatprep.subr.mxu0 0.0
  %869 = vmatpush1.msra.mxu0 0.0
  %870 = vmatprep.subr.mxu0 0.0
  %871 = vmatpush1.msra.mxu0 0.0
  %872 = vmatprep.mubr.f32.mxu0 0.0
  %873 = vmatmul.mubr.f32.gmra.mrb[0].mxu0 %v806
  %v874 = vpop.f32.mrb[0].mxu0
  %v875 = vadd.f32 %v804, %v874
  %v876 = vpop.f32.mrb[0].mxu0
  %877 = vdwg.mxu0
  %v878 = vmax.f32 %v875, 0.0
  %v879 = vld [vmem:[%s4] sm:$0xff]
  %v880 = vld [vmem:[%s4 + $0x8] sm:$0xff]
  %v881 = vld [vmem:[%s4 + $0x10] sm:$0xff]
  %v882 = vld [vmem:[%s4 + $0x18] sm:$0xff]
  %v883 = vld [vmem:[%s5] sm:$0x1]
  %v885 = vlaneseq
  %v886 = vshrl.u32 %v885, 7
  %v887 = vsub.s32 0, %v886
  %v888 = vrot.slane %v883, %v887
  %v891 = vsel %vm135, %v878, 0
  %893 = vmatprep.subr.mxu0 0.0
  %894 = vmatpush1.msra.mxu0 %v879
  %895 = vmatprep.subr.mxu0 0.0
  %896 = vmatpush1.msra.mxu0 %v880
  %897 = vmatprep.subr.mxu0 0.0
  %898 = vmatpush1.msra.mxu0 %v881
  %899 = vmatprep.subr.mxu0 0.0
  %900 = vmatpush1.msra.mxu0 %v882
  %901 = vmatprep.subr.mxu0 0.0
  %902 = vmatpush1.msra.mxu0 0.0
  %903 = vmatprep.subr.mxu0 0.0
  %904 = vmatpush1.msra.mxu0 0.0
  %905 = vmatprep.subr.mxu0 0.0
  %906 = vmatpush1.msra.mxu0 0.0
  %907 = vmatprep.subr.mxu0 0.0
  %908 = vmatpush1.msra.mxu0 0.0
  %909 = vmatprep.subr.mxu0 0.0
  %910 = vmatpush1.msra.mxu0 0.0
  %911 = vmatprep.subr.mxu0 0.0
  %912 = vmatpush1.msra.mxu0 0.0
  %913 = vmatprep.subr.mxu0 0.0
  %914 = vmatpush1.msra.mxu0 0.0
  %915 = vmatprep.subr.mxu0 0.0
  %916 = vmatpush1.msra.mxu0 0.0
  %917 = vmatprep.subr.mxu0 0.0
  %918 = vmatpush1.msra.mxu0 0.0
  %919 = vmatprep.subr.mxu0 0.0
  %920 = vmatpush1.msra.mxu0 0.0
  %921 = vmatprep.subr.mxu0 0.0
  %922 = vmatpush1.msra.mxu0 0.0
  %923 = vmatprep.subr.mxu0 0.0
  %924 = vmatpush1.msra.mxu0 0.0
  %925 = vmatprep.subr.mxu0 0.0
  %926 = vmatpush1.msra.mxu0 0.0
  %927 = vmatprep.subr.mxu0 0.0
  %928 = vmatpush1.msra.mxu0 0.0
  %929 = vmatprep.subr.mxu0 0.0
  %930 = vmatpush1.msra.mxu0 0.0
  %931 = vmatprep.subr.mxu0 0.0
  %932 = vmatpush1.msra.mxu0 0.0
  %933 = vmatprep.subr.mxu0 0.0
  %934 = vmatpush1.msra.mxu0 0.0
  %935 = vmatprep.subr.mxu0 0.0
  %936 = vmatpush1.msra.mxu0 0.0
  %937 = vmatprep.subr.mxu0 0.0
  %938 = vmatpush1.msra.mxu0 0.0
  %939 = vmatprep.subr.mxu0 0.0
  %940 = vmatpush1.msra.mxu0 0.0
  %941 = vmatprep.subr.mxu0 0.0
  %942 = vmatpush1.msra.mxu0 0.0
  %943 = vmatprep.subr.mxu0 0.0
  %944 = vmatpush1.msra.mxu0 0.0
  %945 = vmatprep.subr.mxu0 0.0
  %946 = vmatpush1.msra.mxu0 0.0
  %947 = vmatprep.subr.mxu0 0.0
  %948 = vmatpush1.msra.mxu0 0.0
  %949 = vmatprep.subr.mxu0 0.0
  %950 = vmatpush1.msra.mxu0 0.0
  %951 = vmatprep.subr.mxu0 0.0
  %952 = vmatpush1.msra.mxu0 0.0
  %953 = vmatprep.subr.mxu0 0.0
  %954 = vmatpush1.msra.mxu0 0.0
  %955 = vmatprep.subr.mxu0 0.0
  %956 = vmatpush1.msra.mxu0 0.0
  %957 = vmatprep.mubr.f32.mxu0 0.0
  %958 = vmatmul.mubr.f32.gmra.mrb[0].mxu0 %v891
  %v959 = vpop.f32.mrb[0].mxu0
  %v960 = vadd.f32 %v888, %v959
  %v961 = vpop.f32.mrb[0].mxu0
  %962 = vdwg.mxu0
  %vm963 = vcmask 15360
  %v964 = vsel %vm963, %v960, -inf
  %965 = vmax.xlane.f32.xlu0 %v964
  %v966 = vpop.xlane.xlu0 %965
  %v967 = vsub.f32 %v960, %v966
  %v968 = vmul.f32 %v967, 1.442695
  %v969 = vpow.pop %v968
  %v970 = vsel %vm963, %v969, 0.0
  %971 = vadd.xlane.f32.xlu0 %v970
  %v972 = vpop.xlane.xlu0 %971
  %v973 = vrcp.pop %v972
  %v974 = vmul.f32 %v969, %v973
  %vm975 = vcmask 97296
  %v976 = vsel %vm975, %v960, -inf
  %977 = vmax.xlane.f32.xlu0 %v976
  %v978 = vpop.xlane.xlu0 %977
  %v979 = vsub.f32 %v960, %v978
  %v980 = vmul.f32 %v979, 1.442695
  %v981 = vpow.pop %v980
  %983 = vrot.lane.b32.xlu0 %v981, 126
  %v984 = vpop.permute.xlu0 %983
  %vm986 = vcmask 80896
  %v987 = vsel %vm986, %v984, 0.0
  %988 = vadd.xlane.f32.xlu0 %v987
  %v989 = vpop.xlane.xlu0 %988
  %v990 = vrcp.pop %v989
  %v991 = vmul.f32 %v981, %v990
  %v992 = vsel %vm963, %v974, %v991
  %vm993 = vcmask 97280
  %v994 = vsel %vm993, %v992, %v960
  %vm995 = vcmask 113664
  %996 = vst.msk [vmem:[%s6] sm:$0xff] %vm995, %v994
  // Predicated region
  $region26: #{_lambda_.1} parent=0 // pred_check
    _
  $region27: #{_lambda_.1} parent=0 // pred_check_branch
    %998 = sbr.rel (0) target = $region29
  $region28: #{_lambda_.1} parent=0 // pred_region
    _
  $region29: #{_lambda_.1} parent=0 // pred_fallthru
    _
  // Predicated region
  $region30: #{_lambda_.1} parent=0 // pred_check
    _
  $region31: #{_lambda_.1} parent=0 // pred_check_branch
    %1000 = sbr.rel (0) target = $region33
  $region32: #{_lambda_.1} parent=0 // pred_region
    _
  $region33: #{_lambda_.1} parent=0 // pred_fallthru
    _

</llo_original>
